<compile_context>
chip_gen: v7x
topology: tpu7x:2x2x1
jax: 0.10.0
libtpu: 0.0.40
codegen_flags: <defaults>
</compile_context>

<pallas_src>
import functools

import numpy as np
import jax
import jax.numpy as jnp
from jax.experimental import pallas as pl
from jax.experimental.pallas import tpu as pltpu

_LANE = 128


def _iou_sums_kernel(pred_ref, tgt_ref, out_ref, acc_i, acc_s,
                     *, p_total, tp, needs_mask):
    """Accumulate per-image sum(p*t) and sum(p+t); emit IoU ratio on last block.

    pred_ref, tgt_ref : (TB, TP) tiles of the flattened images, native dtype
    out_ref           : (TB, 128) f32; every lane holds the per-image IoU ratio
    acc_i, acc_s      : (TB, 1) f32 VMEM scratch (per-image running sums)
    """
    j = pl.program_id(1)
    last_j = pl.num_programs(1) - 1

    @pl.when(j == 0)
    def _():
        acc_i[...] = jnp.zeros_like(acc_i)
        acc_s[...] = jnp.zeros_like(acc_s)

    p = pred_ref[...].astype(jnp.float32)
    t = tgt_ref[...].astype(jnp.float32)
    inter = p * t
    both = p + t                      # union = both - inter (epilogue)

    if needs_mask:
        # Only the final pixel block contains out-of-range (stale) columns;
        # restrict the mask cost to that one step.
        @pl.when(j < last_j)
        def _():
            acc_i[...] += jnp.sum(inter, axis=1, keepdims=True)
            acc_s[...] += jnp.sum(both, axis=1, keepdims=True)

        @pl.when(j == last_j)
        def _():
            col = jax.lax.broadcasted_iota(jnp.int32, inter.shape, 1)
            valid = col < (p_total - j * tp)
            acc_i[...] += jnp.sum(jnp.where(valid, inter, 0.0), axis=1, keepdims=True)
            acc_s[...] += jnp.sum(jnp.where(valid, both, 0.0), axis=1, keepdims=True)
    else:
        acc_i[...] += jnp.sum(inter, axis=1, keepdims=True)
        acc_s[...] += jnp.sum(both, axis=1, keepdims=True)

    @pl.when(j == last_j)
    def _():
        i_tot = acc_i[...]                       # (TB, 1)
        u_tot = acc_s[...] - i_tot               # == sum(p + t - p*t)
        # NOTE: union == 0 (both inputs all-zero for an image) yields NaN/Inf,
        # matching the PyTorch reference's behavior.
        ratio = i_tot / u_tot
        out_ref[...] = jnp.broadcast_to(ratio, out_ref.shape).astype(out_ref.dtype)


def iou_loss_pallas(y_pred, y, *, tile_elems=512 * 1024):
    """IOU_Loss.forward: 1 - mean_b( sum(y_pred*y) / sum(y_pred + y - y_pred*y) ).

    tile_elems: target elements streamed per input per grid step
                (512K elems = 2 MiB f32 / 1 MiB bf16 per input; sweepable).
    """
    assert y_pred.shape == y.shape, (y_pred.shape, y.shape)
    B = y_pred.shape[0]
    P = int(np.prod(y_pred.shape[1:])) if y_pred.ndim > 1 else 1

    # Keep native floating dtypes (bf16/f16 stream half the HBM bytes); only
    # non-float inputs are promoted so the kernel math is well defined.
    def _as_float(a):
        return a if jnp.issubdtype(a.dtype, jnp.floating) else a.astype(jnp.float32)

    yp = _as_float(y_pred).reshape(B, P)
    yt = _as_float(y).reshape(B, P)

    itemsizes = [jnp.dtype(a.dtype).itemsize for a in (yp, yt)]
    # Sublane packing: 8 rows for 32-bit, 16 for 16-bit, 32 for 8-bit dtypes.
    sub = max(8 * max(1, 4 // s) for s in itemsizes)
    budget = max(sub * _LANE, int(tile_elems))       # elems per input per step

    if P * min(B, sub) <= budget:
        # Whole image(s) fit along the pixel axis in one step: block several
        # images per step so tiny images still amortize the per-step cost.
        TP = P
        tb_des = max(1, budget // max(P, 1))
        if B <= sub or tb_des >= B:
            TB = B
        else:
            TB = max(sub, (tb_des // sub) * sub)
    else:
        TB = B if B <= sub else sub
        TP = max(_LANE, ((budget // TB) // _LANE) * _LANE)

    n_b = -(-B // TB)
    n_p = -(-P // TP)
    needs_mask = (P % TP) != 0

    kernel = functools.partial(
        _iou_sums_kernel, p_total=P, tp=TP, needs_mask=needs_mask)

    out = pl.pallas_call(
        kernel,
        out_shape=jax.ShapeDtypeStruct((B, _LANE), jnp.float32),
        grid_spec=pltpu.PrefetchScalarGridSpec(
            num_scalar_prefetch=0,
            grid=(n_b, n_p),
            in_specs=[
                pl.BlockSpec((TB, TP), lambda b, j: (b, j)),
                pl.BlockSpec((TB, TP), lambda b, j: (b, j)),
            ],
            out_specs=pl.BlockSpec((TB, _LANE), lambda b, j: (b, 0)),
            scratch_shapes=[
                pltpu.VMEM((TB, 1), jnp.float32),    # running sum(p*t)
                pltpu.VMEM((TB, 1), jnp.float32),    # running sum(p+t)
            ],
        ),
        compiler_params=pltpu.CompilerParams(
            dimension_semantics=("parallel", "arbitrary"),
            vmem_limit_bytes=32 * 1024 * 1024,
        ),
    )(yp, yt)

    # TODO(synk): v7x with B == 1 leaves one TensorCore idle (only "parallel"
    # axis is batch); a core-split of the pixel axis with per-core partial
    # (sum_i, sum_s) outputs combined in the wrapper would recover the 2nd TC.
    ratios = out[:, 0]                    # glue: per-image IoU ratios
    return 1.0 - jnp.mean(ratios)         # glue: batch mean, 1 - mean_iou


# ----------------------------- pure-JAX reference -----------------------------
def _iou_loss_ref(y_pred, y):
    B = y_pred.shape[0]
    yp = y_pred.reshape(B, -1).astype(jnp.float32)
    yt = y.reshape(B, -1).astype(jnp.float32)
    i = yp * yt
    u = yp + yt - i
    return 1.0 - jnp.mean(jnp.sum(i, axis=1) / jnp.sum(u, axis=1))


if __name__ == "__main__":
    key = jax.random.PRNGKey(0)
    k1, k2, k3, k4, k5, k6 = jax.random.split(key, 6)

    # Case 1: small dense batch (P multiple of 128; single grid step).
    y_pred = jax.random.uniform(k1, (2, 4, 16, 16), dtype=jnp.float32)
    y = (jax.random.uniform(k2, (2, 4, 16, 16)) < 0.5).astype(jnp.float32)
    loss = jax.block_until_ready(iou_loss_pallas(y_pred, y))
    ref = jax.block_until_ready(_iou_loss_ref(y_pred, y))
    np.testing.assert_allclose(np.asarray(loss), np.asarray(ref), rtol=1e-5, atol=1e-6)

    # Case 2: non-128-multiple P with a tiny tile budget -> multiple pixel
    # blocks and the in-kernel masked tail (the no-pad path).
    y_pred2 = jax.random.uniform(k3, (3, 1, 25, 37), dtype=jnp.float32)
    y2 = (jax.random.uniform(k4, (3, 1, 25, 37)) < 0.5).astype(jnp.float32)
    loss2 = jax.block_until_ready(iou_loss_pallas(y_pred2, y2, tile_elems=1024))
    ref2 = jax.block_until_ready(_iou_loss_ref(y_pred2, y2))
    np.testing.assert_allclose(np.asarray(loss2), np.asarray(ref2), rtol=1e-5, atol=1e-6)

    # Case 3: native bf16 inputs are streamed as bf16 and upcast in-kernel.
    y_pred3 = jax.random.uniform(k5, (2, 4, 16, 16), dtype=jnp.float32).astype(jnp.bfloat16)
    y3 = (jax.random.uniform(k6, (2, 4, 16, 16)) < 0.5).astype(jnp.bfloat16)
    loss3 = jax.block_until_ready(iou_loss_pallas(y_pred3, y3))
    ref3 = jax.block_until_ready(_iou_loss_ref(y_pred3, y3))
    np.testing.assert_allclose(np.asarray(loss3), np.asarray(ref3), rtol=1e-5, atol=1e-5)

    print("KERNEL_OK")
</pallas_src>

<mosaic_0001>
module attributes {stable_mosaic.version = 11 : i64} {
  func.func @_iou_sums_kernel(%arg0: i32, %arg1: i32, %arg2: memref<2x1024xf32, #tpu.memory_space<vmem>>, %arg3: memref<2x1024xf32, #tpu.memory_space<vmem>>, %arg4: memref<2x128xf32, #tpu.memory_space<vmem>>, %arg5: memref<2x1xf32, #tpu.memory_space<vmem>>, %arg6: memref<2x1xf32, #tpu.memory_space<vmem>>) attributes {dimension_semantics = [#tpu.dimension_semantics<parallel>, #tpu.dimension_semantics<arbitrary>], iteration_bounds = array<i64: 1, 1>, scalar_prefetch = 0 : i64, scratch_operands = 2 : i64, tpu.core_type = #tpu.core_type<tc>, window_params = [{transform_indices = @transform_0, window_bounds = array<i64: 2, 1024>}, {transform_indices = @transform_1, window_bounds = array<i64: 2, 1024>}, {transform_indices = @transform_2, window_bounds = array<i64: 2, 128>}]} {
    %c0_i32 = arith.constant 0 : i32
    %0 = arith.cmpi eq, %arg1, %c0_i32 : i32
    %1 = arith.extui %0 : i1 to i32
    %c0_i32_0 = arith.constant 0 : i32
    %2 = arith.cmpi ne, %1, %c0_i32_0 : i32
    scf.if %2 {
      %cst_15 = arith.constant 0.000000e+00 : f32
      %20 = vector.broadcast %cst_15 : f32 to vector<2x1xf32>
      %c0_16 = arith.constant 0 : index
      %c0_17 = arith.constant 0 : index
      %21 = vector.load %arg5[%c0_16, %c0_17] : memref<2x1xf32, #tpu.memory_space<vmem>>, vector<2x1xf32>
      tpu.vector_store %arg5[%c0_16, %c0_17], %20 {strides = array<i32>} : memref<2x1xf32, #tpu.memory_space<vmem>>, vector<2x1xf32>,
      %cst_18 = arith.constant 0.000000e+00 : f32
      %22 = vector.broadcast %cst_18 : f32 to vector<2x1xf32>
      %c0_19 = arith.constant 0 : index
      %c0_20 = arith.constant 0 : index
      %23 = vector.load %arg6[%c0_19, %c0_20] : memref<2x1xf32, #tpu.memory_space<vmem>>, vector<2x1xf32>
      tpu.vector_store %arg6[%c0_19, %c0_20], %22 {strides = array<i32>} : memref<2x1xf32, #tpu.memory_space<vmem>>, vector<2x1xf32>,
    } else {
    }
    %c0 = arith.constant 0 : index
    %c0_1 = arith.constant 0 : index
    %3 = vector.load %arg2[%c0, %c0_1] : memref<2x1024xf32, #tpu.memory_space<vmem>>, vector<2x1024xf32>
    %c0_2 = arith.constant 0 : index
    %c0_3 = arith.constant 0 : index
    %4 = vector.load %arg3[%c0_2, %c0_3] : memref<2x1024xf32, #tpu.memory_space<vmem>>, vector<2x1024xf32>
    %5 = arith.mulf %3, %4 : vector<2x1024xf32>
    %6 = arith.addf %3, %4 : vector<2x1024xf32>
    %c0_4 = arith.constant 0 : index
    %c0_5 = arith.constant 0 : index
    %7 = vector.load %arg5[%c0_4, %c0_5] : memref<2x1xf32, #tpu.memory_space<vmem>>, vector<2x1xf32>
    %cst = arith.constant dense<0.000000e+00> : vector<2xf32>
    %8 = vector.multi_reduction <add>, %5, %cst [1] : vector<2x1024xf32> to vector<2xf32>
    %9 = vector.shape_cast %8 : vector<2xf32> to vector<2x1xf32>
    %10 = arith.addf %7, %9 : vector<2x1xf32>
    %c0_6 = arith.constant 0 : index
    %c0_7 = arith.constant 0 : index
    %11 = vector.load %arg5[%c0_6, %c0_7] : memref<2x1xf32, #tpu.memory_space<vmem>>, vector<2x1xf32>
    tpu.vector_store %arg5[%c0_6, %c0_7], %10 {strides = array<i32>} : memref<2x1xf32, #tpu.memory_space<vmem>>, vector<2x1xf32>,
    %c0_8 = arith.constant 0 : index
    %c0_9 = arith.constant 0 : index
    %12 = vector.load %arg6[%c0_8, %c0_9] : memref<2x1xf32, #tpu.memory_space<vmem>>, vector<2x1xf32>
    %cst_10 = arith.constant dense<0.000000e+00> : vector<2xf32>
    %13 = vector.multi_reduction <add>, %6, %cst_10 [1] : vector<2x1024xf32> to vector<2xf32>
    %14 = vector.shape_cast %13 : vector<2xf32> to vector<2x1xf32>
    %15 = arith.addf %12, %14 : vector<2x1xf32>
    %c0_11 = arith.constant 0 : index
    %c0_12 = arith.constant 0 : index
    %16 = vector.load %arg6[%c0_11, %c0_12] : memref<2x1xf32, #tpu.memory_space<vmem>>, vector<2x1xf32>
    tpu.vector_store %arg6[%c0_11, %c0_12], %15 {strides = array<i32>} : memref<2x1xf32, #tpu.memory_space<vmem>>, vector<2x1xf32>,
    %c0_i32_13 = arith.constant 0 : i32
    %17 = arith.cmpi eq, %arg1, %c0_i32_13 : i32
    %18 = arith.extui %17 : i1 to i32
    %c0_i32_14 = arith.constant 0 : i32
    %19 = arith.cmpi ne, %18, %c0_i32_14 : i32
    scf.if %19 {
      %c0_15 = arith.constant 0 : index
      %c0_16 = arith.constant 0 : index
      %20 = vector.load %arg5[%c0_15, %c0_16] : memref<2x1xf32, #tpu.memory_space<vmem>>, vector<2x1xf32>
      %c0_17 = arith.constant 0 : index
      %c0_18 = arith.constant 0 : index
      %21 = vector.load %arg6[%c0_17, %c0_18] : memref<2x1xf32, #tpu.memory_space<vmem>>, vector<2x1xf32>
      %22 = arith.subf %21, %20 : vector<2x1xf32>
      %23 = arith.divf %20, %22 : vector<2x1xf32>
      %24 = vector.shape_cast %23 : vector<2x1xf32> to vector<2x1xf32>
      %25 = vector.broadcast %24 : vector<2x1xf32> to vector<2x128xf32>
      %c0_19 = arith.constant 0 : index
      %c0_20 = arith.constant 0 : index
      %26 = vector.load %arg4[%c0_19, %c0_20] : memref<2x128xf32, #tpu.memory_space<vmem>>, vector<2x128xf32>
      tpu.vector_store %arg4[%c0_19, %c0_20], %25 {strides = array<i32>} : memref<2x128xf32, #tpu.memory_space<vmem>>, vector<2x128xf32>,
    } else {
    }
    return
  }
  func.func @transform_0(%arg0: i32, %arg1: i32) -> (i32, i32) {
    %c0_i32 = arith.constant 0 : i32
    return %arg0, %arg1 : i32, i32
  }
  func.func @transform_1(%arg0: i32, %arg1: i32) -> (i32, i32) {
    %c0_i32 = arith.constant 0 : i32
    return %arg0, %arg1 : i32, i32
  }
  func.func @transform_2(%arg0: i32, %arg1: i32) -> (i32, i32) {
    %c0_i32 = arith.constant 0 : i32
    %c0_i32_0 = arith.constant 0 : i32
    return %arg0, %c0_i32 : i32, i32
  }
}

</mosaic_0001>

<llo_original>
// kernel: tpu_custom_call.1
$region0: #{tpu_custom_call.1}
  #allocation0 [shape = 'u32[]', space=smem, size = 0x4, offset = 0x4, fixed_abs, tag = 'smem constant byte address 0x4 - core index']
  #allocation1 [shape = 'u32[144,128]{1,0:T(1,128)}', space=vmem, size = 0x12000, scoped, tag = 'internal scratch']
  #allocation2 [shape = 'f32[2,1]{1,0:T(2,128)}', space=vmem, size = 0x400, scoped, tag = 'scratch operand']
  #allocation3 [shape = 'f32[2,1]{1,0:T(2,128)}', space=vmem, size = 0x400, scoped, tag = 'scratch operand']
  %s0 = inlined_call_operand.hbm [shape: f32[2,1024], index: 0, kind: input, shape index: {}]
  %s1 = inlined_call_operand.hbm [shape: f32[2,1024], index: 1, kind: input, shape index: {}]
  %s2 = inlined_call_operand.hbm [shape: f32[2,128], index: 2, kind: output, shape index: {}]
  %s3 = sld [smem:[#allocation0]]
  $region34: #{tpu_custom_call.1} parent=0
    _
  %s5 = ssub.s32 1, %s3
  %s6 = scalar_select 0, %s5, %s3
  $region1: #{tpu_custom_call.1} parent=0
    #allocation4 [shape = 'u8[8192]{0}', space=vmem, size = 0x2000, scoped, tag = 'input window, operand 0, single buffered']
    #allocation5 [shape = 's32[1]{0}', space=sflag, size = 0x4, scoped, tag = 'scoped memory for tpu_custom_call.1']
    #allocation6 [shape = 's32[1]{0}', space=sflag, size = 0x4, scoped, tag = 'scoped memory for tpu_custom_call.1']
    #allocation7 [shape = 'u8[8192]{0}', space=vmem, size = 0x2000, scoped, tag = 'input window, operand 1, single buffered']
    #allocation8 [shape = 's32[1]{0}', space=sflag, size = 0x4, scoped, tag = 'scoped memory for tpu_custom_call.1']
    #allocation9 [shape = 'u8[1024]{0}', space=vmem, size = 0x400, scoped, tag = 'output window, operand 0, single buffered']
    %7 = vsyncpa [#allocation5], 0
    %8 = vsyncpa [#allocation8], 0
    %9 = vsyncpa [#allocation6], 0
    // Predicated region
    $region2: #{tpu_custom_call.1} parent=1 // pred_check
      _
    $region3: #{tpu_custom_call.1} parent=1 // pred_check_branch
      %11 = sbr.rel (0) target = $region5
    $region4: #{tpu_custom_call.1} parent=1 // pred_region
      %s13 = ssub.s32 256, 256
      %14 = vsyncadd [#allocation5], %s13
      %s16 = sshll.u32 [#allocation4], 4
      %s17 = int_to_ptr.vmem [resolvable:$true] %s16
      %19 = dma.hbm_to_vmem [thread:$0]  %s0, 256, %s17, [#allocation5]
    $region5: #{tpu_custom_call.1} parent=1 // pred_fallthru
      _
    // Predicated region
    $region6: #{tpu_custom_call.1} parent=1 // pred_check
      _
    $region7: #{tpu_custom_call.1} parent=1 // pred_check_branch
      %21 = sbr.rel (0) target = $region9
    $region8: #{tpu_custom_call.1} parent=1 // pred_region
      %s23 = ssub.s32 256, 256
      %24 = vsyncadd [#allocation8], %s23
      %s26 = sshll.u32 [#allocation7], 4
      %s27 = int_to_ptr.vmem [resolvable:$true] %s26
      %29 = dma.hbm_to_vmem [thread:$0]  %s1, 256, %s27, [#allocation8]
    $region9: #{tpu_custom_call.1} parent=1 // pred_fallthru
      _
    // Predicated region
    $region10: #{tpu_custom_call.1} parent=1 // pred_check
      _
    $region11: #{tpu_custom_call.1} parent=1 // pred_check_branch
      %31 = sbr.rel (0) target = $region13
    $region12: #{tpu_custom_call.1} parent=1 // pred_region
      %32 = dma.done [#allocation5], 256
    $region13: #{tpu_custom_call.1} parent=1 // pred_fallthru
      _
    // Predicated region
    $region14: #{tpu_custom_call.1} parent=1 // pred_check
      _
    $region15: #{tpu_custom_call.1} parent=1 // pred_check_branch
      %34 = sbr.rel (0) target = $region17
    $region16: #{tpu_custom_call.1} parent=1 // pred_region
      %35 = dma.done [#allocation8], 256
    $region17: #{tpu_custom_call.1} parent=1 // pred_fallthru
      _
    %p36 = scmp.eq.s32.totalorder 0, 0
    // Predicated region
    $region18: #{tpu_custom_call.1} parent=1 // pred_check
      %p37 = pneg %p36
    $region19: #{tpu_custom_call.1} parent=1 // pred_check_branch
      %39 = sbr.rel (%p37) target = $region21
    $region20: #{tpu_custom_call.1} parent=1 // pred_region
      %vm40 = vcmask 1024
      %41 = vst.msk [vmem:[#allocation2] sm:$0x3] %vm40, 0.0
      %42 = vst.msk [vmem:[#allocation3] sm:$0x3] %vm40, 0.0
    $region21: #{tpu_custom_call.1} parent=1 // pred_fallthru
      _
    %v43 = vld [vmem:[#allocation4] sm:$0xff]
    %v44 = vld [vmem:[#allocation4 + $0x8] sm:$0xff]
    %v45 = vld [vmem:[#allocation7] sm:$0xff]
    %v46 = vld [vmem:[#allocation7 + $0x8] sm:$0xff]
    %v47 = vmul.f32 %v43, %v45
    %v48 = vmul.f32 %v44, %v46
    %v49 = vadd.f32 %v43, %v45
    %v50 = vadd.f32 %v44, %v46
    %v51 = vld [vmem:[#allocation2] sm:$0x3]
    %v54 = vcombine.high %v47, %v47
    %v56 = vunpack.c.l.s4 1983009808
    %v57 = vunpack.c.0.s8 %v56
    %v58 = vlaneseq
    %v59 = vshrl.u32 %v58, 7
    %v60 = vsub.s32 %v57, %v59
    %v61 = vrot.slane %v47, %v60
    %v63 = vunpack.c.l.s4 1983009808
    %v64 = vunpack.c.0.s8 %v63
    %v65 = vlaneseq
    %v66 = vshrl.u32 %v65, 7
    %v67 = vsub.s32 %v64, %v66
    %v68 = vrot.slane %v54, %v67
    %v69 = vcombine.high %v61, %v61
    %v70 = vcombine.high %v68, %v68
    %v71 = vcombine.high %v48, %v48
    %v73 = vunpack.c.l.s4 1983009808
    %v74 = vunpack.c.0.s8 %v73
    %v75 = vlaneseq
    %v76 = vshrl.u32 %v75, 7
    %v77 = vsub.s32 %v74, %v76
    %v78 = vrot.slane %v48, %v77
    %v80 = vunpack.c.l.s4 1983009808
    %v81 = vunpack.c.0.s8 %v80
    %v82 = vlaneseq
    %v83 = vshrl.u32 %v82, 7
    %v84 = vsub.s32 %v81, %v83
    %v85 = vrot.slane %v71, %v84
    %v86 = vcombine.high %v78, %v78
    %v87 = vcombine.high %v85, %v85
    %vm96 = vcmask 1041408
    %v97 = vsel %vm96, %v61, 0.0
    %v98 = vsel %vm96, %v69, 0.0
    %v99 = vadd.f32 %v97, %v98
    %v100 = vsel %vm96, %v68, 0.0
    %v101 = vadd.f32 %v99, %v100
    %v102 = vsel %vm96, %v70, 0.0
    %v103 = vadd.f32 %v101, %v102
    %v104 = vsel %vm96, %v78, 0.0
    %v105 = vadd.f32 %v103, %v104
    %v106 = vsel %vm96, %v86, 0.0
    %v107 = vadd.f32 %v105, %v106
    %v108 = vsel %vm96, %v85, 0.0
    %v109 = vadd.f32 %v107, %v108
    %v110 = vsel %vm96, %v87, 0.0
    %v111 = vadd.f32 %v109, %v110
    %112 = vadd.xlane.f32.xlu0 %v111
    %v113 = vpop.xlane.xlu0 %112
    %v114 = vadd.f32 %v51, %v113
    %vm115 = vcmask 1024
    %116 = vst.msk [vmem:[#allocation2] sm:$0x3] %vm115, %v114
    %v117 = vld [vmem:[#allocation3] sm:$0x3]
    %v120 = vcombine.high %v49, %v49
    %v122 = vunpack.c.l.s4 1983009808
    %v123 = vunpack.c.0.s8 %v122
    %v124 = vlaneseq
    %v125 = vshrl.u32 %v124, 7
    %v126 = vsub.s32 %v123, %v125
    %v127 = vrot.slane %v49, %v126
    %v129 = vunpack.c.l.s4 1983009808
    %v130 = vunpack.c.0.s8 %v129
    %v131 = vlaneseq
    %v132 = vshrl.u32 %v131, 7
    %v133 = vsub.s32 %v130, %v132
    %v134 = vrot.slane %v120, %v133
    %v135 = vcombine.high %v127, %v127
    %v136 = vcombine.high %v134, %v134
    %v137 = vcombine.high %v50, %v50
    %v139 = vunpack.c.l.s4 1983009808
    %v140 = vunpack.c.0.s8 %v139
    %v141 = vlaneseq
    %v142 = vshrl.u32 %v141, 7
    %v143 = vsub.s32 %v140, %v142
    %v144 = vrot.slane %v50, %v143
    %v146 = vunpack.c.l.s4 1983009808
    %v147 = vunpack.c.0.s8 %v146
    %v148 = vlaneseq
    %v149 = vshrl.u32 %v148, 7
    %v150 = vsub.s32 %v147, %v149
    %v151 = vrot.slane %v137, %v150
    %v152 = vcombine.high %v144, %v144
    %v153 = vcombine.high %v151, %v151
    %v162 = vsel %vm96, %v127, 0.0
    %v163 = vsel %vm96, %v135, 0.0
    %v164 = vadd.f32 %v162, %v163
    %v165 = vsel %vm96, %v134, 0.0
    %v166 = vadd.f32 %v164, %v165
    %v167 = vsel %vm96, %v136, 0.0
    %v168 = vadd.f32 %v166, %v167
    %v169 = vsel %vm96, %v144, 0.0
    %v170 = vadd.f32 %v168, %v169
    %v171 = vsel %vm96, %v152, 0.0
    %v172 = vadd.f32 %v170, %v171
    %v173 = vsel %vm96, %v151, 0.0
    %v174 = vadd.f32 %v172, %v173
    %v175 = vsel %vm96, %v153, 0.0
    %v176 = vadd.f32 %v174, %v175
    %177 = vadd.xlane.f32.xlu0 %v176
    %v178 = vpop.xlane.xlu0 %177
    %v179 = vadd.f32 %v117, %v178
    %180 = vst.msk [vmem:[#allocation3] sm:$0x3] %vm115, %v179
    // Predicated region
    $region22: #{tpu_custom_call.1} parent=1 // pred_check
      %p181 = pneg %p36
    $region23: #{tpu_custom_call.1} parent=1 // pred_check_branch
      %183 = sbr.rel (%p181) target = $region25
    $region24: #{tpu_custom_call.1} parent=1 // pred_region
      %v184 = vld [vmem:[#allocation2] sm:$0x3]
      %v185 = vld [vmem:[#allocation3] sm:$0x3]
      %v186 = vsub.f32 %v185, %v184
      %v187 = vrcp.pop %v186
      %v188 = vmul.f32 %v184, %v187
      %190 = vset.pattern.permute.xlu0 0
      %191 = vperm.xlu0 %190, %v188
      %v192 = vpop.permute.xlu0 %191
      %194 = vst [vmem:[#allocation9] sm:$0x3] %v192
    $region25: #{tpu_custom_call.1} parent=1 // pred_fallthru
      _
    // Predicated region
    $region26: #{tpu_custom_call.1} parent=1 // pred_check
      _
    $region27: #{tpu_custom_call.1} parent=1 // pred_check_branch
      %196 = sbr.rel (0) target = $region29
    $region28: #{tpu_custom_call.1} parent=1 // pred_region
      %s198 = ssub.s32 32, 32
      %199 = vsyncadd [#allocation6], %s198
      %s201 = sshll.u32 [#allocation9], 4
      %s202 = int_to_ptr.vmem [resolvable:$true] %s201
      %204 = dma.vmem_to_hbm [thread:$0]  %s202, 32, %s2, [#allocation6]
    $region29: #{tpu_custom_call.1} parent=1 // pred_fallthru
      _
    // Predicated region
    $region30: #{tpu_custom_call.1} parent=1 // pred_check
      _
    $region31: #{tpu_custom_call.1} parent=1 // pred_check_branch
      %206 = sbr.rel (0) target = $region33
    $region32: #{tpu_custom_call.1} parent=1 // pred_region
      %207 = dma.done [#allocation6], 32
    $region33: #{tpu_custom_call.1} parent=1 // pred_fallthru
      _
    %208 = vsyncpa [#allocation5], 1
    %209 = vsyncpa [#allocation8], 1
    %210 = vsyncpa [#allocation6], 1

</llo_original>
